<compile_context>
chip_gen: v7x
topology: tpu7x:2x2x1
jax: 0.10.0
libtpu: 0.0.40
codegen_flags: <defaults>
</compile_context>

<pallas_src>
import jax
import jax.numpy as jnp
from jax import lax
from jax.experimental import pallas as pl
from jax.experimental.pallas import tpu as pltpu


# ----------------------------- Pallas kernel ------------------------------- #
def rnn_multilayer_kernel(
    x0_ref,       # (Bp, I)       padded x_0 for the merged encoders
    v_ref,        # (T*Bp, I)     flattened time-major input sequence
    encw_ref,     # (I, 2H)       [enc0_W | enc1_W]   (transposed)
    encb_ref,     # (1, 2H)       [enc0_b | enc1_b]
    wih0p_ref,    # (I, 2H)       [Wih0 | 0]          (zero-padded right half)
    wblock_ref,   # (2H, 2H)      [[Whh0, Wih1], [0, Whh1]]
    decw_ref,     # (2H, Opad)    [[0], [dec_W]]      (top H rows zero, lane-padded)
    decb_ref,     # (1, Opad)     lane-padded decoder bias
    out_ref,      # (T*Bp, Opad)  flattened time-major output (lane-dense)
    xslab_ref,    # scratch (T*Bp, 2H): [x_t @ Wih0 | 0]
    hslab_ref,    # scratch (T*Bp, 2H): per output step t: [junk | h1_t]
):
    TB = v_ref.shape[0]
    Bp = x0_ref.shape[0]
    T = TB // Bp
    H = wblock_ref.shape[0] // 2

    # ---- merged encoders: one (Bp, I)@(I, 2H) -> [h0_init | h1_init] ----
    h_enc = (
        jnp.dot(x0_ref[...], encw_ref[...], preferred_element_type=jnp.float32)
        + encb_ref[...]
    )

    # ---- hoisted layer-0 input projection (off the serial chain) ----
    # One (T*Bp, I)@(I, 2H); right half is exactly zero by construction.
    xslab_ref[...] = jnp.dot(
        v_ref[...], wih0p_ref[...], preferred_element_type=jnp.float32
    )

    wblock = wblock_ref[...]

    # ---- fused, skewed recurrence ----
    # carry = [h0_{m-1} | h1_{m-2}]
    # carry @ Wblock = [h0_{m-1}@Whh0 | h0_{m-1}@Wih1 + h1_{m-2}@Whh1]
    # so one (Bp,2H)@(2H,2H) matmul per macro-step advances layer 0 at time m
    # and layer 1 at time m-1.  Critical path: T+1 dependent matmuls.

    # macro-step 0: only the layer-0 half advances; layer-1 half stays h1_init.
    a0 = jnp.dot(h_enc, wblock, preferred_element_type=jnp.float32)
    a0 = a0 + xslab_ref[pl.ds(0, Bp), :]
    carry = jnp.concatenate(
        [jnp.maximum(a0[:, :H], 0.0), h_enc[:, H:]], axis=1
    )  # = [h0_0 | h1_init]

    # macro-steps 1..T-1 (uniform): carry <- relu(carry @ Wblock + [xproj0_m | 0]).
    # New carry = [h0_m | h1_{m-1}]; store the full carry at output row m-1 —
    # the decoder weight's zero top half discards the layer-0 columns.
    def step(m, c):
        src = pl.ds(pl.multiple_of(m * Bp, Bp), Bp)
        dst = pl.ds(pl.multiple_of((m - 1) * Bp, Bp), Bp)
        a = jnp.dot(c, wblock, preferred_element_type=jnp.float32)
        new = jnp.maximum(a + xslab_ref[src, :], 0.0)
        hslab_ref[dst, :] = new
        return new

    # TODO(synk): switch to partial unroll (unroll=4/8) once T grows past a few dozen.
    carry = lax.fori_loop(1, T, step, carry, unroll=True)

    # macro-step T (epilogue): only the layer-1 half (h1_{T-1}) is meaningful;
    # the stale layer-0 half is zeroed by the decoder weight.
    a_last = jnp.dot(carry, wblock, preferred_element_type=jnp.float32)
    hslab_ref[pl.ds((T - 1) * Bp, Bp), :] = jnp.maximum(a_last, 0.0)

    # ---- hoisted decoder: one (T*Bp, 2H)@(2H, Opad) + bias, one lane-dense store ----
    out_ref[...] = (
        jnp.dot(hslab_ref[...], decw_ref[...], preferred_element_type=jnp.float32)
        + decb_ref[...]
    )


# ------------------------------ wrapper ------------------------------------ #
def rnn_multilayer_forward(x0, V, params):
    """x0: (B, I), V: (B, T, I)  ->  (B, T, O), all float32."""
    B, T, I = V.shape
    H = params["enc_w"].shape[-1]
    O = params["dec_w"].shape[-1]

    # Pad batch to f32 sublane granularity (8).  Padded rows are independent
    # junk and are sliced off afterwards, so the result is exact.
    Bp = max(8, ((B + 7) // 8) * 8)
    pad = Bp - B
    x0_p = jnp.pad(x0, ((0, pad), (0, 0)))
    V_p = jnp.pad(V, ((0, pad), (0, 0), (0, 0)))

    # Time-major, flattened to a sublane-dense 2-D slab (T*Bp, I).
    v_flat = jnp.transpose(V_p, (1, 0, 2)).reshape(T * Bp, I)

    # Merged encoders -> (I, 2H), (1, 2H); output is the concatenated carry.
    enc_w_m = jnp.concatenate([params["enc_w"][0], params["enc_w"][1]], axis=1)
    enc_b_m = jnp.concatenate([params["enc_b"][0], params["enc_b"][1]], axis=1)

    # Layer-0 input projection weight, zero-padded so the xproj slab's right
    # half (the layer-1 columns) is exactly zero.
    wih0_pad = jnp.concatenate(
        [params["wih0"], jnp.zeros((I, H), jnp.float32)], axis=1
    )

    # Fused block recurrence weight [[Whh0, Wih1], [0, Whh1]]  (2H, 2H).
    wblock = jnp.concatenate(
        [
            jnp.concatenate([params["whh"][0], params["wih1"]], axis=1),
            jnp.concatenate([jnp.zeros((H, H), jnp.float32), params["whh"][1]], axis=1),
        ],
        axis=0,
    )

    # Lane-dense decoder: pad O up to 128 lanes; top-H rows are zero so the
    # layer-0 halves stored in the hidden slab are discarded for free.
    Opad = 128
    dec_w_blk = jnp.zeros((2 * H, Opad), jnp.float32).at[H:, :O].set(params["dec_w"])
    dec_b_pad = jnp.zeros((1, Opad), jnp.float32).at[:, :O].set(params["dec_b"])

    out_flat = pl.pallas_call(
        rnn_multilayer_kernel,
        out_shape=jax.ShapeDtypeStruct((T * Bp, Opad), jnp.float32),
        in_specs=[pl.BlockSpec(memory_space=pltpu.MemorySpace.VMEM)] * 8,
        out_specs=pl.BlockSpec(memory_space=pltpu.MemorySpace.VMEM),
        scratch_shapes=[
            pltpu.VMEM((T * Bp, 2 * H), jnp.float32),  # x-projection slab
            pltpu.VMEM((T * Bp, 2 * H), jnp.float32),  # hidden/output slab
        ],
        compiler_params=pltpu.CompilerParams(
            # v5e scoped default is 16 MiB; 32 MiB covers larger-T variants
            # while still leaving double-buffer headroom on v7x (64 MiB phys).
            vmem_limit_bytes=32 * 1024 * 1024,
        ),
    )(x0_p, v_flat, enc_w_m, enc_b_m, wih0_pad, wblock, dec_w_blk, dec_b_pad)

    out_tm = out_flat[:, :O].reshape(T, Bp, O)[:, :B, :]  # drop lane & batch pad
    return jnp.transpose(out_tm, (1, 0, 2))               # (B, T, O)


# ------------------------- pure-JAX reference ------------------------------ #
def rnn_multilayer_ref(x0, V, p):
    dot = lambda a, b: jnp.dot(a, b, precision=lax.Precision.HIGHEST)
    B, T, I = V.shape
    h0 = dot(x0, p["enc_w"][0]) + p["enc_b"][0, 0]
    h1 = dot(x0, p["enc_w"][1]) + p["enc_b"][1, 0]
    outs = []
    for t in range(T):
        h0 = jax.nn.relu(dot(V[:, t], p["wih0"]) + dot(h0, p["whh"][0]))
        h1 = jax.nn.relu(dot(h0, p["wih1"]) + dot(h1, p["whh"][1]))
        outs.append(dot(h1, p["dec_w"]) + p["dec_b"][0])
    return jnp.stack(outs, axis=1)


# ------------------------------ param init --------------------------------- #
def init_params(key, input_size=2, hidden_size=32, output_size=2, num_layers=2):
    ks = jax.random.split(key, 8)
    s = 0.1
    return {
        # encoders: PyTorch Linear weight is (H, I); stored transposed (L, I, H)
        "enc_w": s * jax.random.normal(ks[0], (num_layers, input_size, hidden_size), jnp.float32),
        "enc_b": s * jax.random.normal(ks[1], (num_layers, 1, hidden_size), jnp.float32),
        # RNN weights (bias=False): stored transposed as (in, out)
        "wih0": s * jax.random.normal(ks[2], (input_size, hidden_size), jnp.float32),
        "wih1": s * jax.random.normal(ks[3], (hidden_size, hidden_size), jnp.float32),
        "whh": s * jax.random.normal(ks[4], (num_layers, hidden_size, hidden_size), jnp.float32),
        # decoder
        "dec_w": s * jax.random.normal(ks[5], (hidden_size, output_size), jnp.float32),
        "dec_b": s * jax.random.normal(ks[6], (1, output_size), jnp.float32),
    }


if __name__ == "__main__":
    key = jax.random.PRNGKey(0)
    k_p, k_x, k_v = jax.random.split(key, 3)

    B, T, I, H, O = 2, 8, 2, 32, 2
    params = init_params(k_p, input_size=I, hidden_size=H, output_size=O, num_layers=2)

    x0 = jax.random.normal(k_x, (B, I), jnp.float32)     # x_0: (batch, input_size)
    V = jax.random.normal(k_v, (B, T, I), jnp.float32)   # V:   (batch, seq, input_size)

    fwd = jax.jit(rnn_multilayer_forward)
    out = jax.block_until_ready(fwd(x0, V, params))

    ref = rnn_multilayer_ref(x0, V, params)
    assert out.shape == (B, T, O), out.shape
    # f32 MXU matmuls are multi-bf16-pass; 1e-4 bounds pass-count differences
    # vs the HIGHEST-precision reference while still catching structural bugs.
    assert jnp.allclose(out, ref, rtol=1e-4, atol=1e-4), (
        float(jnp.max(jnp.abs(out - ref)))
    )
    print("KERNEL_OK")
</pallas_src>

<mosaic_0001>
module attributes {stable_mosaic.version = 11 : i64} {
  func.func @rnn_multilayer_kernel(%arg0: memref<8x2xf32, #tpu.memory_space<vmem>>, %arg1: memref<64x2xf32, #tpu.memory_space<vmem>>, %arg2: memref<2x64xf32, #tpu.memory_space<vmem>>, %arg3: memref<1x64xf32, #tpu.memory_space<vmem>>, %arg4: memref<2x64xf32, #tpu.memory_space<vmem>>, %arg5: memref<64x64xf32, #tpu.memory_space<vmem>>, %arg6: memref<64x128xf32, #tpu.memory_space<vmem>>, %arg7: memref<1x128xf32, #tpu.memory_space<vmem>>, %arg8: memref<64x128xf32, #tpu.memory_space<vmem>>, %arg9: memref<64x64xf32, #tpu.memory_space<vmem>>, %arg10: memref<64x64xf32, #tpu.memory_space<vmem>>) attributes {dimension_semantics = [], scalar_prefetch = 0 : i64, scratch_operands = 2 : i64, tpu.core_type = #tpu.core_type<tc>} {
    %c0 = arith.constant 0 : index
    %c0_0 = arith.constant 0 : index
    %0 = vector.load %arg0[%c0, %c0_0] : memref<8x2xf32, #tpu.memory_space<vmem>>, vector<8x2xf32>
    %c0_1 = arith.constant 0 : index
    %c0_2 = arith.constant 0 : index
    %1 = vector.load %arg2[%c0_1, %c0_2] : memref<2x64xf32, #tpu.memory_space<vmem>>, vector<2x64xf32>
    %cst = arith.constant dense<0.000000e+00> : vector<8x64xf32>
    %2 = tpu.matmul %0, %1, %cst {dimension_numbers = #tpu.dot_dimension_numbers<[1], [0], [0], [1], [0, 0, 1, 1], [], []>} : vector<8x2xf32>, vector<2x64xf32>, vector<8x64xf32> -> vector<8x64xf32>
    %c0_3 = arith.constant 0 : index
    %c0_4 = arith.constant 0 : index
    %3 = vector.load %arg3[%c0_3, %c0_4] : memref<1x64xf32, #tpu.memory_space<vmem>>, vector<1x64xf32>
    %4 = vector.broadcast %3 : vector<1x64xf32> to vector<8x64xf32>
    %5 = arith.addf %2, %4 : vector<8x64xf32>
    %c0_5 = arith.constant 0 : index
    %c0_6 = arith.constant 0 : index
    %6 = vector.load %arg1[%c0_5, %c0_6] : memref<64x2xf32, #tpu.memory_space<vmem>>, vector<64x2xf32>
    %c0_7 = arith.constant 0 : index
    %c0_8 = arith.constant 0 : index
    %7 = vector.load %arg4[%c0_7, %c0_8] : memref<2x64xf32, #tpu.memory_space<vmem>>, vector<2x64xf32>
    %cst_9 = arith.constant dense<0.000000e+00> : vector<64x64xf32>
    %8 = tpu.matmul %6, %7, %cst_9 {dimension_numbers = #tpu.dot_dimension_numbers<[1], [0], [0], [1], [0, 0, 1, 1], [], []>} : vector<64x2xf32>, vector<2x64xf32>, vector<64x64xf32> -> vector<64x64xf32>
    %c0_10 = arith.constant 0 : index
    %c0_11 = arith.constant 0 : index
    %9 = vector.load %arg9[%c0_10, %c0_11] : memref<64x64xf32, #tpu.memory_space<vmem>>, vector<64x64xf32>
    tpu.vector_store %arg9[%c0_10, %c0_11], %8 {strides = array<i32>} : memref<64x64xf32, #tpu.memory_space<vmem>>, vector<64x64xf32>,
    %c0_12 = arith.constant 0 : index
    %c0_13 = arith.constant 0 : index
    %10 = vector.load %arg5[%c0_12, %c0_13] : memref<64x64xf32, #tpu.memory_space<vmem>>, vector<64x64xf32>
    %cst_14 = arith.constant dense<0.000000e+00> : vector<8x64xf32>
    %11 = tpu.matmul %5, %10, %cst_14 {dimension_numbers = #tpu.dot_dimension_numbers<[1], [0], [0], [1], [0, 0, 1, 1], [], []>} : vector<8x64xf32>, vector<64x64xf32>, vector<8x64xf32> -> vector<8x64xf32>
    %c0_15 = arith.constant 0 : index
    %c0_16 = arith.constant 0 : index
    %12 = vector.load %arg9[%c0_15, %c0_16] : memref<64x64xf32, #tpu.memory_space<vmem>>, vector<8x64xf32>
    %13 = arith.addf %11, %12 : vector<8x64xf32>
    %14 = vector.extract_strided_slice %13 {offsets = [0, 0], sizes = [8, 32], strides = [1, 1]} : vector<8x64xf32> to vector<8x32xf32>
    %cst_17 = arith.constant 0.000000e+00 : f32
    %15 = vector.broadcast %cst_17 : f32 to vector<8x32xf32>
    %16 = arith.maximumf %14, %15 : vector<8x32xf32>
    %17 = vector.extract_strided_slice %5 {offsets = [0, 32], sizes = [8, 32], strides = [1, 1]} : vector<8x64xf32> to vector<8x32xf32>
    %18 = tpu.concatenate %16, %17 in 1 : vector<8x32xf32>, vector<8x32xf32> -> vector<8x64xf32>
    %c1_i32 = arith.constant 1 : i32
    %c8_i32 = arith.constant 8 : i32
    %19 = arith.muli %c1_i32, %c8_i32 : i32
    %20 = tpu.assume_multiple %19, 8 : i32
    %c1_i32_18 = arith.constant 1 : i32
    %21 = arith.subi %c1_i32, %c1_i32_18 : i32
    %c8_i32_19 = arith.constant 8 : i32
    %22 = arith.muli %21, %c8_i32_19 : i32
    %23 = tpu.assume_multiple %22, 8 : i32
    %cst_20 = arith.constant dense<0.000000e+00> : vector<8x64xf32>
    %24 = tpu.matmul %18, %10, %cst_20 {dimension_numbers = #tpu.dot_dimension_numbers<[1], [0], [0], [1], [0, 0, 1, 1], [], []>} : vector<8x64xf32>, vector<64x64xf32>, vector<8x64xf32> -> vector<8x64xf32>
    %25 = arith.index_cast %20 : i32 to index
    %c0_21 = arith.constant 0 : index
    %26 = vector.load %arg9[%25, %c0_21] : memref<64x64xf32, #tpu.memory_space<vmem>>, vector<8x64xf32>
    %27 = arith.addf %24, %26 : vector<8x64xf32>
    %cst_22 = arith.constant 0.000000e+00 : f32
    %28 = vector.broadcast %cst_22 : f32 to vector<8x64xf32>
    %29 = arith.maximumf %27, %28 : vector<8x64xf32>
    %30 = arith.index_cast %23 : i32 to index
    %c0_23 = arith.constant 0 : index
    %31 = vector.load %arg10[%30, %c0_23] : memref<64x64xf32, #tpu.memory_space<vmem>>, vector<8x64xf32>
    tpu.vector_store %arg10[%30, %c0_23], %29 {strides = array<i32>} : memref<64x64xf32, #tpu.memory_space<vmem>>, vector<8x64xf32>,
    %c2_i32 = arith.constant 2 : i32
    %c8_i32_24 = arith.constant 8 : i32
    %32 = arith.muli %c2_i32, %c8_i32_24 : i32
    %33 = tpu.assume_multiple %32, 8 : i32
    %c1_i32_25 = arith.constant 1 : i32
    %34 = arith.subi %c2_i32, %c1_i32_25 : i32
    %c8_i32_26 = arith.constant 8 : i32
    %35 = arith.muli %34, %c8_i32_26 : i32
    %36 = tpu.assume_multiple %35, 8 : i32
    %cst_27 = arith.constant dense<0.000000e+00> : vector<8x64xf32>
    %37 = tpu.matmul %29, %10, %cst_27 {dimension_numbers = #tpu.dot_dimension_numbers<[1], [0], [0], [1], [0, 0, 1, 1], [], []>} : vector<8x64xf32>, vector<64x64xf32>, vector<8x64xf32> -> vector<8x64xf32>
    %38 = arith.index_cast %33 : i32 to index
    %c0_28 = arith.constant 0 : index
    %39 = vector.load %arg9[%38, %c0_28] : memref<64x64xf32, #tpu.memory_space<vmem>>, vector<8x64xf32>
    %40 = arith.addf %37, %39 : vector<8x64xf32>
    %cst_29 = arith.constant 0.000000e+00 : f32
    %41 = vector.broadcast %cst_29 : f32 to vector<8x64xf32>
    %42 = arith.maximumf %40, %41 : vector<8x64xf32>
    %43 = arith.index_cast %36 : i32 to index
    %c0_30 = arith.constant 0 : index
    %44 = vector.load %arg10[%43, %c0_30] : memref<64x64xf32, #tpu.memory_space<vmem>>, vector<8x64xf32>
    tpu.vector_store %arg10[%43, %c0_30], %42 {strides = array<i32>} : memref<64x64xf32, #tpu.memory_space<vmem>>, vector<8x64xf32>,
    %c3_i32 = arith.constant 3 : i32
    %c8_i32_31 = arith.constant 8 : i32
    %45 = arith.muli %c3_i32, %c8_i32_31 : i32
    %46 = tpu.assume_multiple %45, 8 : i32
    %c1_i32_32 = arith.constant 1 : i32
    %47 = arith.subi %c3_i32, %c1_i32_32 : i32
    %c8_i32_33 = arith.constant 8 : i32
    %48 = arith.muli %47, %c8_i32_33 : i32
    %49 = tpu.assume_multiple %48, 8 : i32
    %cst_34 = arith.constant dense<0.000000e+00> : vector<8x64xf32>
    %50 = tpu.matmul %42, %10, %cst_34 {dimension_numbers = #tpu.dot_dimension_numbers<[1], [0], [0], [1], [0, 0, 1, 1], [], []>} : vector<8x64xf32>, vector<64x64xf32>, vector<8x64xf32> -> vector<8x64xf32>
    %51 = arith.index_cast %46 : i32 to index
    %c0_35 = arith.constant 0 : index
    %52 = vector.load %arg9[%51, %c0_35] : memref<64x64xf32, #tpu.memory_space<vmem>>, vector<8x64xf32>
    %53 = arith.addf %50, %52 : vector<8x64xf32>
    %cst_36 = arith.constant 0.000000e+00 : f32
    %54 = vector.broadcast %cst_36 : f32 to vector<8x64xf32>
    %55 = arith.maximumf %53, %54 : vector<8x64xf32>
    %56 = arith.index_cast %49 : i32 to index
    %c0_37 = arith.constant 0 : index
    %57 = vector.load %arg10[%56, %c0_37] : memref<64x64xf32, #tpu.memory_space<vmem>>, vector<8x64xf32>
    tpu.vector_store %arg10[%56, %c0_37], %55 {strides = array<i32>} : memref<64x64xf32, #tpu.memory_space<vmem>>, vector<8x64xf32>,
    %c4_i32 = arith.constant 4 : i32
    %c8_i32_38 = arith.constant 8 : i32
    %58 = arith.muli %c4_i32, %c8_i32_38 : i32
    %59 = tpu.assume_multiple %58, 8 : i32
    %c1_i32_39 = arith.constant 1 : i32
    %60 = arith.subi %c4_i32, %c1_i32_39 : i32
    %c8_i32_40 = arith.constant 8 : i32
    %61 = arith.muli %60, %c8_i32_40 : i32
    %62 = tpu.assume_multiple %61, 8 : i32
    %cst_41 = arith.constant dense<0.000000e+00> : vector<8x64xf32>
    %63 = tpu.matmul %55, %10, %cst_41 {dimension_numbers = #tpu.dot_dimension_numbers<[1], [0], [0], [1], [0, 0, 1, 1], [], []>} : vector<8x64xf32>, vector<64x64xf32>, vector<8x64xf32> -> vector<8x64xf32>
    %64 = arith.index_cast %59 : i32 to index
    %c0_42 = arith.constant 0 : index
    %65 = vector.load %arg9[%64, %c0_42] : memref<64x64xf32, #tpu.memory_space<vmem>>, vector<8x64xf32>
    %66 = arith.addf %63, %65 : vector<8x64xf32>
    %cst_43 = arith.constant 0.000000e+00 : f32
    %67 = vector.broadcast %cst_43 : f32 to vector<8x64xf32>
    %68 = arith.maximumf %66, %67 : vector<8x64xf32>
    %69 = arith.index_cast %62 : i32 to index
    %c0_44 = arith.constant 0 : index
    %70 = vector.load %arg10[%69, %c0_44] : memref<64x64xf32, #tpu.memory_space<vmem>>, vector<8x64xf32>
    tpu.vector_store %arg10[%69, %c0_44], %68 {strides = array<i32>} : memref<64x64xf32, #tpu.memory_space<vmem>>, vector<8x64xf32>,
    %c5_i32 = arith.constant 5 : i32
    %c8_i32_45 = arith.constant 8 : i32
    %71 = arith.muli %c5_i32, %c8_i32_45 : i32
    %72 = tpu.assume_multiple %71, 8 : i32
    %c1_i32_46 = arith.constant 1 : i32
    %73 = arith.subi %c5_i32, %c1_i32_46 : i32
    %c8_i32_47 = arith.constant 8 : i32
    %74 = arith.muli %73, %c8_i32_47 : i32
    %75 = tpu.assume_multiple %74, 8 : i32
    %cst_48 = arith.constant dense<0.000000e+00> : vector<8x64xf32>
    %76 = tpu.matmul %68, %10, %cst_48 {dimension_numbers = #tpu.dot_dimension_numbers<[1], [0], [0], [1], [0, 0, 1, 1], [], []>} : vector<8x64xf32>, vector<64x64xf32>, vector<8x64xf32> -> vector<8x64xf32>
    %77 = arith.index_cast %72 : i32 to index
    %c0_49 = arith.constant 0 : index
    %78 = vector.load %arg9[%77, %c0_49] : memref<64x64xf32, #tpu.memory_space<vmem>>, vector<8x64xf32>
    %79 = arith.addf %76, %78 : vector<8x64xf32>
    %cst_50 = arith.constant 0.000000e+00 : f32
    %80 = vector.broadcast %cst_50 : f32 to vector<8x64xf32>
    %81 = arith.maximumf %79, %80 : vector<8x64xf32>
    %82 = arith.index_cast %75 : i32 to index
    %c0_51 = arith.constant 0 : index
    %83 = vector.load %arg10[%82, %c0_51] : memref<64x64xf32, #tpu.memory_space<vmem>>, vector<8x64xf32>
    tpu.vector_store %arg10[%82, %c0_51], %81 {strides = array<i32>} : memref<64x64xf32, #tpu.memory_space<vmem>>, vector<8x64xf32>,
    %c6_i32 = arith.constant 6 : i32
    %c8_i32_52 = arith.constant 8 : i32
    %84 = arith.muli %c6_i32, %c8_i32_52 : i32
    %85 = tpu.assume_multiple %84, 8 : i32
    %c1_i32_53 = arith.constant 1 : i32
    %86 = arith.subi %c6_i32, %c1_i32_53 : i32
    %c8_i32_54 = arith.constant 8 : i32
    %87 = arith.muli %86, %c8_i32_54 : i32
    %88 = tpu.assume_multiple %87, 8 : i32
    %cst_55 = arith.constant dense<0.000000e+00> : vector<8x64xf32>
    %89 = tpu.matmul %81, %10, %cst_55 {dimension_numbers = #tpu.dot_dimension_numbers<[1], [0], [0], [1], [0, 0, 1, 1], [], []>} : vector<8x64xf32>, vector<64x64xf32>, vector<8x64xf32> -> vector<8x64xf32>
    %90 = arith.index_cast %85 : i32 to index
    %c0_56 = arith.constant 0 : index
    %91 = vector.load %arg9[%90, %c0_56] : memref<64x64xf32, #tpu.memory_space<vmem>>, vector<8x64xf32>
    %92 = arith.addf %89, %91 : vector<8x64xf32>
    %cst_57 = arith.constant 0.000000e+00 : f32
    %93 = vector.broadcast %cst_57 : f32 to vector<8x64xf32>
    %94 = arith.maximumf %92, %93 : vector<8x64xf32>
    %95 = arith.index_cast %88 : i32 to index
    %c0_58 = arith.constant 0 : index
    %96 = vector.load %arg10[%95, %c0_58] : memref<64x64xf32, #tpu.memory_space<vmem>>, vector<8x64xf32>
    tpu.vector_store %arg10[%95, %c0_58], %94 {strides = array<i32>} : memref<64x64xf32, #tpu.memory_space<vmem>>, vector<8x64xf32>,
    %c7_i32 = arith.constant 7 : i32
    %c8_i32_59 = arith.constant 8 : i32
    %97 = arith.muli %c7_i32, %c8_i32_59 : i32
    %98 = tpu.assume_multiple %97, 8 : i32
    %c1_i32_60 = arith.constant 1 : i32
    %99 = arith.subi %c7_i32, %c1_i32_60 : i32
    %c8_i32_61 = arith.constant 8 : i32
    %100 = arith.muli %99, %c8_i32_61 : i32
    %101 = tpu.assume_multiple %100, 8 : i32
    %cst_62 = arith.constant dense<0.000000e+00> : vector<8x64xf32>
    %102 = tpu.matmul %94, %10, %cst_62 {dimension_numbers = #tpu.dot_dimension_numbers<[1], [0], [0], [1], [0, 0, 1, 1], [], []>} : vector<8x64xf32>, vector<64x64xf32>, vector<8x64xf32> -> vector<8x64xf32>
    %103 = arith.index_cast %98 : i32 to index
    %c0_63 = arith.constant 0 : index
    %104 = vector.load %arg9[%103, %c0_63] : memref<64x64xf32, #tpu.memory_space<vmem>>, vector<8x64xf32>
    %105 = arith.addf %102, %104 : vector<8x64xf32>
    %cst_64 = arith.constant 0.000000e+00 : f32
    %106 = vector.broadcast %cst_64 : f32 to vector<8x64xf32>
    %107 = arith.maximumf %105, %106 : vector<8x64xf32>
    %108 = arith.index_cast %101 : i32 to index
    %c0_65 = arith.constant 0 : index
    %109 = vector.load %arg10[%108, %c0_65] : memref<64x64xf32, #tpu.memory_space<vmem>>, vector<8x64xf32>
    tpu.vector_store %arg10[%108, %c0_65], %107 {strides = array<i32>} : memref<64x64xf32, #tpu.memory_space<vmem>>, vector<8x64xf32>,
    %c7_i32_66 = arith.constant 7 : i32
    %cst_67 = arith.constant dense<0.000000e+00> : vector<8x64xf32>
    %110 = tpu.matmul %107, %10, %cst_67 {dimension_numbers = #tpu.dot_dimension_numbers<[1], [0], [0], [1], [0, 0, 1, 1], [], []>} : vector<8x64xf32>, vector<64x64xf32>, vector<8x64xf32> -> vector<8x64xf32>
    %cst_68 = arith.constant 0.000000e+00 : f32
    %111 = vector.broadcast %cst_68 : f32 to vector<8x64xf32>
    %112 = arith.maximumf %110, %111 : vector<8x64xf32>
    %c56 = arith.constant 56 : index
    %c0_69 = arith.constant 0 : index
    %113 = vector.load %arg10[%c56, %c0_69] : memref<64x64xf32, #tpu.memory_space<vmem>>, vector<8x64xf32>
    tpu.vector_store %arg10[%c56, %c0_69], %112 {strides = array<i32>} : memref<64x64xf32, #tpu.memory_space<vmem>>, vector<8x64xf32>,
    %c0_70 = arith.constant 0 : index
    %c0_71 = arith.constant 0 : index
    %114 = vector.load %arg10[%c0_70, %c0_71] : memref<64x64xf32, #tpu.memory_space<vmem>>, vector<64x64xf32>
    %c0_72 = arith.constant 0 : index
    %c0_73 = arith.constant 0 : index
    %115 = vector.load %arg6[%c0_72, %c0_73] : memref<64x128xf32, #tpu.memory_space<vmem>>, vector<64x128xf32>
    %cst_74 = arith.constant dense<0.000000e+00> : vector<64x128xf32>
    %116 = tpu.matmul %114, %115, %cst_74 {dimension_numbers = #tpu.dot_dimension_numbers<[1], [0], [0], [1], [0, 0, 1, 1], [], []>} : vector<64x64xf32>, vector<64x128xf32>, vector<64x128xf32> -> vector<64x128xf32>
    %c0_75 = arith.constant 0 : index
    %c0_76 = arith.constant 0 : index
    %117 = vector.load %arg7[%c0_75, %c0_76] : memref<1x128xf32, #tpu.memory_space<vmem>>, vector<1x128xf32>
    %118 = vector.broadcast %117 : vector<1x128xf32> to vector<64x128xf32>
    %119 = arith.addf %116, %118 : vector<64x128xf32>
    %c0_77 = arith.constant 0 : index
    %c0_78 = arith.constant 0 : index
    %120 = vector.load %arg8[%c0_77, %c0_78] : memref<64x128xf32, #tpu.memory_space<vmem>>, vector<64x128xf32>
    tpu.vector_store %arg8[%c0_77, %c0_78], %119 {strides = array<i32>} : memref<64x128xf32, #tpu.memory_space<vmem>>, vector<64x128xf32>,
    return
  }
}

</mosaic_0001>

<llo_original>
// kernel: rnn_multilayer_forward.1
$region0: #{rnn_multilayer_forward.1}
  #allocation0 [shape = 'u32[]', space=smem, size = 0x4, offset = 0x4, fixed_abs, tag = 'smem constant byte address 0x4 - core index']
  #allocation1 [shape = 'u32[144,128]{1,0:T(1,128)}', space=vmem, size = 0x12000, scoped, tag = 'internal scratch']
  #allocation2 [shape = 'f32[64,64]{1,0:T(8,128)}', space=vmem, size = 0x8000, scoped, tag = 'scratch operand']
  #allocation3 [shape = 'f32[64,64]{1,0:T(8,128)}', space=vmem, size = 0x8000, scoped, tag = 'scratch operand']
  %s0 = inlined_call_operand.vmem [shape: f32[8,2], index: 0, kind: input, shape index: {}]
  %s1 = inlined_call_operand.vmem [shape: f32[64,2], index: 1, kind: input, shape index: {}]
  %s2 = inlined_call_operand.vmem [shape: f32[2,64], index: 2, kind: input, shape index: {}]
  %s3 = inlined_call_operand.vmem [shape: f32[1,64], index: 3, kind: input, shape index: {}]
  %s4 = inlined_call_operand.vmem [shape: f32[2,64], index: 4, kind: input, shape index: {}]
  %s5 = inlined_call_operand.vmem [shape: f32[64,64], index: 5, kind: input, shape index: {}]
  %s6 = inlined_call_operand.vmem [shape: f32[64,128], index: 6, kind: input, shape index: {}]
  %s7 = inlined_call_operand.vmem [shape: f32[1,128], index: 7, kind: input, shape index: {}]
  %s8 = inlined_call_operand.vmem [shape: f32[64,128], index: 8, kind: output, shape index: {}]
  %s9 = sld [smem:[#allocation0]]
  $region42: #{rnn_multilayer_forward.1} parent=0
    _
  %s11 = ssub.s32 1, %s9
  %s12 = scalar_select 0, %s11, %s9
  // Predicated region
  $region2: #{rnn_multilayer_forward.1} parent=0 // pred_check
    _
  $region3: #{rnn_multilayer_forward.1} parent=0 // pred_check_branch
    %14 = sbr.rel (0) target = $region5
  $region4: #{rnn_multilayer_forward.1} parent=0 // pred_region
    _
  $region5: #{rnn_multilayer_forward.1} parent=0 // pred_fallthru
    _
  // Predicated region
  $region6: #{rnn_multilayer_forward.1} parent=0 // pred_check
    _
  $region7: #{rnn_multilayer_forward.1} parent=0 // pred_check_branch
    %16 = sbr.rel (0) target = $region9
  $region8: #{rnn_multilayer_forward.1} parent=0 // pred_region
    _
  $region9: #{rnn_multilayer_forward.1} parent=0 // pred_fallthru
    _
  // Predicated region
  $region10: #{rnn_multilayer_forward.1} parent=0 // pred_check
    _
  $region11: #{rnn_multilayer_forward.1} parent=0 // pred_check_branch
    %18 = sbr.rel (0) target = $region13
  $region12: #{rnn_multilayer_forward.1} parent=0 // pred_region
    _
  $region13: #{rnn_multilayer_forward.1} parent=0 // pred_fallthru
    _
  // Predicated region
  $region14: #{rnn_multilayer_forward.1} parent=0 // pred_check
    _
  $region15: #{rnn_multilayer_forward.1} parent=0 // pred_check_branch
    %20 = sbr.rel (0) target = $region17
  $region16: #{rnn_multilayer_forward.1} parent=0 // pred_region
    _
  $region17: #{rnn_multilayer_forward.1} parent=0 // pred_fallthru
    _
  // Predicated region
  $region18: #{rnn_multilayer_forward.1} parent=0 // pred_check
    _
  $region19: #{rnn_multilayer_forward.1} parent=0 // pred_check_branch
    %22 = sbr.rel (0) target = $region21
  $region20: #{rnn_multilayer_forward.1} parent=0 // pred_region
    _
  $region21: #{rnn_multilayer_forward.1} parent=0 // pred_fallthru
    _
  // Predicated region
  $region22: #{rnn_multilayer_forward.1} parent=0 // pred_check
    _
  $region23: #{rnn_multilayer_forward.1} parent=0 // pred_check_branch
    %24 = sbr.rel (0) target = $region25
  $region24: #{rnn_multilayer_forward.1} parent=0 // pred_region
    _
  $region25: #{rnn_multilayer_forward.1} parent=0 // pred_fallthru
    _
  // Predicated region
  $region26: #{rnn_multilayer_forward.1} parent=0 // pred_check
    _
  $region27: #{rnn_multilayer_forward.1} parent=0 // pred_check_branch
    %26 = sbr.rel (0) target = $region29
  $region28: #{rnn_multilayer_forward.1} parent=0 // pred_region
    _
  $region29: #{rnn_multilayer_forward.1} parent=0 // pred_fallthru
    _
  // Predicated region
  $region30: #{rnn_multilayer_forward.1} parent=0 // pred_check
    _
  $region31: #{rnn_multilayer_forward.1} parent=0 // pred_check_branch
    %28 = sbr.rel (0) target = $region33
  $region32: #{rnn_multilayer_forward.1} parent=0 // pred_region
    _
  $region33: #{rnn_multilayer_forward.1} parent=0 // pred_fallthru
    _
  %v29 = vld [vmem:[%s0] sm:$0xff]
  %v30 = vld [vmem:[%s2] sm:$0x3]
  %v31 = vld [vmem:[%s3] sm:$0x1]
  %v33 = vlaneseq
  %v34 = vshrl.u32 %v33, 7
  %v35 = vsub.s32 0, %v34
  %v36 = vrot.slane %v31, %v35
  %vm38 = vcmask 15360
  %v40 = vsel %vm38, %v29, 0
  %vm42 = vcmask 1041408
  %v44 = vsel %vm42, %v30, 0
  %46 = vmatprep.subr.mxu0 0.0
  %47 = vmatpush1.msra.mxu0 %v44
  %48 = vmatprep.subr.mxu0 0.0
  %49 = vmatpush1.msra.mxu0 0.0
  %50 = vmatprep.subr.mxu0 0.0
  %51 = vmatpush1.msra.mxu0 0.0
  %52 = vmatprep.subr.mxu0 0.0
  %53 = vmatpush1.msra.mxu0 0.0
  %54 = vmatprep.subr.mxu0 0.0
  %55 = vmatpush1.msra.mxu0 0.0
  %56 = vmatprep.subr.mxu0 0.0
  %57 = vmatpush1.msra.mxu0 0.0
  %58 = vmatprep.subr.mxu0 0.0
  %59 = vmatpush1.msra.mxu0 0.0
  %60 = vmatprep.subr.mxu0 0.0
  %61 = vmatpush1.msra.mxu0 0.0
  %62 = vmatprep.subr.mxu0 0.0
  %63 = vmatpush1.msra.mxu0 0.0
  %64 = vmatprep.subr.mxu0 0.0
  %65 = vmatpush1.msra.mxu0 0.0
  %66 = vmatprep.subr.mxu0 0.0
  %67 = vmatpush1.msra.mxu0 0.0
  %68 = vmatprep.subr.mxu0 0.0
  %69 = vmatpush1.msra.mxu0 0.0
  %70 = vmatprep.subr.mxu0 0.0
  %71 = vmatpush1.msra.mxu0 0.0
  %72 = vmatprep.subr.mxu0 0.0
  %73 = vmatpush1.msra.mxu0 0.0
  %74 = vmatprep.subr.mxu0 0.0
  %75 = vmatpush1.msra.mxu0 0.0
  %76 = vmatprep.subr.mxu0 0.0
  %77 = vmatpush1.msra.mxu0 0.0
  %78 = vmatprep.subr.mxu0 0.0
  %79 = vmatpush1.msra.mxu0 0.0
  %80 = vmatprep.subr.mxu0 0.0
  %81 = vmatpush1.msra.mxu0 0.0
  %82 = vmatprep.subr.mxu0 0.0
  %83 = vmatpush1.msra.mxu0 0.0
  %84 = vmatprep.subr.mxu0 0.0
  %85 = vmatpush1.msra.mxu0 0.0
  %86 = vmatprep.subr.mxu0 0.0
  %87 = vmatpush1.msra.mxu0 0.0
  %88 = vmatprep.subr.mxu0 0.0
  %89 = vmatpush1.msra.mxu0 0.0
  %90 = vmatprep.subr.mxu0 0.0
  %91 = vmatpush1.msra.mxu0 0.0
  %92 = vmatprep.subr.mxu0 0.0
  %93 = vmatpush1.msra.mxu0 0.0
  %94 = vmatprep.subr.mxu0 0.0
  %95 = vmatpush1.msra.mxu0 0.0
  %96 = vmatprep.subr.mxu0 0.0
  %97 = vmatpush1.msra.mxu0 0.0
  %98 = vmatprep.subr.mxu0 0.0
  %99 = vmatpush1.msra.mxu0 0.0
  %100 = vmatprep.subr.mxu0 0.0
  %101 = vmatpush1.msra.mxu0 0.0
  %102 = vmatprep.subr.mxu0 0.0
  %103 = vmatpush1.msra.mxu0 0.0
  %104 = vmatprep.subr.mxu0 0.0
  %105 = vmatpush1.msra.mxu0 0.0
  %106 = vmatprep.subr.mxu0 0.0
  %107 = vmatpush1.msra.mxu0 0.0
  %108 = vmatprep.subr.mxu0 0.0
  %109 = vmatpush1.msra.mxu0 0.0
  %110 = vmatprep.mubr.f32.mxu0 0.0
  %111 = vmatmul.mubr.f32.gmra.mrb[0].mxu0 %v40
  %v112 = vpop.f32.mrb[0].mxu0
  %v113 = vadd.f32 %v36, %v112
  %v114 = vpop.f32.mrb[0].mxu0
  %115 = vdwg.mxu0
  %v116 = vld [vmem:[%s1] sm:$0xff]
  %v117 = vld [vmem:[%s1 + $0x8] sm:$0xff]
  %v118 = vld [vmem:[%s1 + $0x10] sm:$0xff]
  %v119 = vld [vmem:[%s1 + $0x18] sm:$0xff]
  %v120 = vld [vmem:[%s1 + $0x20] sm:$0xff]
  %v121 = vld [vmem:[%s1 + $0x28] sm:$0xff]
  %v122 = vld [vmem:[%s1 + $0x30] sm:$0xff]
  %v123 = vld [vmem:[%s1 + $0x38] sm:$0xff]
  %v124 = vld [vmem:[%s4] sm:$0x3]
  %v126 = vsel %vm38, %v116, 0
  %v129 = vsel %vm38, %v117, 0
  %v132 = vsel %vm38, %v118, 0
  %v135 = vsel %vm38, %v119, 0
  %v138 = vsel %vm38, %v120, 0
  %v141 = vsel %vm38, %v121, 0
  %v144 = vsel %vm38, %v122, 0
  %v147 = vsel %vm38, %v123, 0
  %v150 = vsel %vm42, %v124, 0
  %152 = vmatprep.subr.mxu0 0.0
  %153 = vmatpush1.msra.mxu0 %v150
  %154 = vmatprep.subr.mxu0 0.0
  %155 = vmatpush1.msra.mxu0 0.0
  %156 = vmatprep.subr.mxu0 0.0
  %157 = vmatpush1.msra.mxu0 0.0
  %158 = vmatprep.subr.mxu0 0.0
  %159 = vmatpush1.msra.mxu0 0.0
  %160 = vmatprep.subr.mxu0 0.0
  %161 = vmatpush1.msra.mxu0 0.0
  %162 = vmatprep.subr.mxu0 0.0
  %163 = vmatpush1.msra.mxu0 0.0
  %164 = vmatprep.subr.mxu0 0.0
  %165 = vmatpush1.msra.mxu0 0.0
  %166 = vmatprep.subr.mxu0 0.0
  %167 = vmatpush1.msra.mxu0 0.0
  %168 = vmatprep.subr.mxu0 0.0
  %169 = vmatpush1.msra.mxu0 0.0
  %170 = vmatprep.subr.mxu0 0.0
  %171 = vmatpush1.msra.mxu0 0.0
  %172 = vmatprep.subr.mxu0 0.0
  %173 = vmatpush1.msra.mxu0 0.0
  %174 = vmatprep.subr.mxu0 0.0
  %175 = vmatpush1.msra.mxu0 0.0
  %176 = vmatprep.subr.mxu0 0.0
  %177 = vmatpush1.msra.mxu0 0.0
  %178 = vmatprep.subr.mxu0 0.0
  %179 = vmatpush1.msra.mxu0 0.0
  %180 = vmatprep.subr.mxu0 0.0
  %181 = vmatpush1.msra.mxu0 0.0
  %182 = vmatprep.subr.mxu0 0.0
  %183 = vmatpush1.msra.mxu0 0.0
  %184 = vmatprep.subr.mxu0 0.0
  %185 = vmatpush1.msra.mxu0 0.0
  %186 = vmatprep.subr.mxu0 0.0
  %187 = vmatpush1.msra.mxu0 0.0
  %188 = vmatprep.subr.mxu0 0.0
  %189 = vmatpush1.msra.mxu0 0.0
  %190 = vmatprep.subr.mxu0 0.0
  %191 = vmatpush1.msra.mxu0 0.0
  %192 = vmatprep.subr.mxu0 0.0
  %193 = vmatpush1.msra.mxu0 0.0
  %194 = vmatprep.subr.mxu0 0.0
  %195 = vmatpush1.msra.mxu0 0.0
  %196 = vmatprep.subr.mxu0 0.0
  %197 = vmatpush1.msra.mxu0 0.0
  %198 = vmatprep.subr.mxu0 0.0
  %199 = vmatpush1.msra.mxu0 0.0
  %200 = vmatprep.subr.mxu0 0.0
  %201 = vmatpush1.msra.mxu0 0.0
  %202 = vmatprep.subr.mxu0 0.0
  %203 = vmatpush1.msra.mxu0 0.0
  %204 = vmatprep.subr.mxu0 0.0
  %205 = vmatpush1.msra.mxu0 0.0
  %206 = vmatprep.subr.mxu0 0.0
  %207 = vmatpush1.msra.mxu0 0.0
  %208 = vmatprep.subr.mxu0 0.0
  %209 = vmatpush1.msra.mxu0 0.0
  %210 = vmatprep.subr.mxu0 0.0
  %211 = vmatpush1.msra.mxu0 0.0
  %212 = vmatprep.subr.mxu0 0.0
  %213 = vmatpush1.msra.mxu0 0.0
  %214 = vmatprep.subr.mxu0 0.0
  %215 = vmatpush1.msra.mxu0 0.0
  %216 = vmatprep.mubr.f32.mxu0 0.0
  %217 = vmatmul.mubr.f32.gmra.mrb[0].mxu0 %v126
  %v218 = vpop.f32.mrb[0].mxu0
  %v219 = vadd.f32 0.0, %v218
  %v220 = vpop.f32.mrb[0].mxu0
  %221 = vmatprep.mubr.f32.mxu0 0.0
  %222 = vmatmul.mubr.f32.gmra.mrb[0].mxu0 %v129
  %v223 = vpop.f32.mrb[0].mxu0
  %v224 = vadd.f32 0.0, %v223
  %v225 = vpop.f32.mrb[0].mxu0
  %226 = vmatprep.mubr.f32.mxu0 0.0
  %227 = vmatmul.mubr.f32.gmra.mrb[0].mxu0 %v132
  %v228 = vpop.f32.mrb[0].mxu0
  %v229 = vadd.f32 0.0, %v228
  %v230 = vpop.f32.mrb[0].mxu0
  %231 = vmatprep.mubr.f32.mxu0 0.0
  %232 = vmatmul.mubr.f32.gmra.mrb[0].mxu0 %v135
  %v233 = vpop.f32.mrb[0].mxu0
  %v234 = vadd.f32 0.0, %v233
  %v235 = vpop.f32.mrb[0].mxu0
  %236 = vmatprep.mubr.f32.mxu0 0.0
  %237 = vmatmul.mubr.f32.gmra.mrb[0].mxu0 %v138
  %v238 = vpop.f32.mrb[0].mxu0
  %v239 = vadd.f32 0.0, %v238
  %v240 = vpop.f32.mrb[0].mxu0
  %241 = vmatprep.mubr.f32.mxu0 0.0
  %242 = vmatmul.mubr.f32.gmra.mrb[0].mxu0 %v141
  %v243 = vpop.f32.mrb[0].mxu0
  %v244 = vadd.f32 0.0, %v243
  %v245 = vpop.f32.mrb[0].mxu0
  %246 = vmatprep.mubr.f32.mxu0 0.0
  %247 = vmatmul.mubr.f32.gmra.mrb[0].mxu0 %v144
  %v248 = vpop.f32.mrb[0].mxu0
  %v249 = vadd.f32 0.0, %v248
  %v250 = vpop.f32.mrb[0].mxu0
  %251 = vmatprep.mubr.f32.mxu0 0.0
  %252 = vmatmul.mubr.f32.gmra.mrb[0].mxu0 %v147
  %v253 = vpop.f32.mrb[0].mxu0
  %v254 = vadd.f32 0.0, %v253
  %v255 = vpop.f32.mrb[0].mxu0
  %256 = vdwg.mxu0
  %vm257 = vcmask 523264
  %258 = vst.msk [vmem:[#allocation2] sm:$0xff] %vm257, %v219
  %259 = vst.msk [vmem:[#allocation2 + $0x8] sm:$0xff] %vm257, %v224
  %260 = vst.msk [vmem:[#allocation2 + $0x10] sm:$0xff] %vm257, %v229
  %261 = vst.msk [vmem:[#allocation2 + $0x18] sm:$0xff] %vm257, %v234
  %262 = vst.msk [vmem:[#allocation2 + $0x20] sm:$0xff] %vm257, %v239
  %263 = vst.msk [vmem:[#allocation2 + $0x28] sm:$0xff] %vm257, %v244
  %264 = vst.msk [vmem:[#allocation2 + $0x30] sm:$0xff] %vm257, %v249
  %265 = vst.msk [vmem:[#allocation2 + $0x38] sm:$0xff] %vm257, %v254
  %v266 = vld [vmem:[%s5] sm:$0xff]
  %v267 = vld [vmem:[%s5 + $0x8] sm:$0xff]
  %v268 = vld [vmem:[%s5 + $0x10] sm:$0xff]
  %v269 = vld [vmem:[%s5 + $0x18] sm:$0xff]
  %v270 = vld [vmem:[%s5 + $0x20] sm:$0xff]
  %v271 = vld [vmem:[%s5 + $0x28] sm:$0xff]
  %v272 = vld [vmem:[%s5 + $0x30] sm:$0xff]
  %v273 = vld [vmem:[%s5 + $0x38] sm:$0xff]
  %v274 = vld [vmem:[#allocation2] sm:$0xff]
  %v276 = vsel %vm257, %v113, 0
  %278 = vmatprep.subr.mxu0 0.0
  %279 = vmatpush1.msra.mxu0 %v266
  %280 = vmatprep.subr.mxu0 0.0
  %281 = vmatpush1.msra.mxu0 %v267
  %282 = vmatprep.subr.mxu0 0.0
  %283 = vmatpush1.msra.mxu0 %v268
  %284 = vmatprep.subr.mxu0 0.0
  %285 = vmatpush1.msra.mxu0 %v269
  %286 = vmatprep.subr.mxu0 0.0
  %287 = vmatpush1.msra.mxu0 %v270
  %288 = vmatprep.subr.mxu0 0.0
  %289 = vmatpush1.msra.mxu0 %v271
  %290 = vmatprep.subr.mxu0 0.0
  %291 = vmatpush1.msra.mxu0 %v272
  %292 = vmatprep.subr.mxu0 0.0
  %293 = vmatpush1.msra.mxu0 %v273
  %294 = vmatprep.subr.mxu0 0.0
  %295 = vmatpush1.msra.mxu0 0.0
  %296 = vmatprep.subr.mxu0 0.0
  %297 = vmatpush1.msra.mxu0 0.0
  %298 = vmatprep.subr.mxu0 0.0
  %299 = vmatpush1.msra.mxu0 0.0
  %300 = vmatprep.subr.mxu0 0.0
  %301 = vmatpush1.msra.mxu0 0.0
  %302 = vmatprep.subr.mxu0 0.0
  %303 = vmatpush1.msra.mxu0 0.0
  %304 = vmatprep.subr.mxu0 0.0
  %305 = vmatpush1.msra.mxu0 0.0
  %306 = vmatprep.subr.mxu0 0.0
  %307 = vmatpush1.msra.mxu0 0.0
  %308 = vmatprep.subr.mxu0 0.0
  %309 = vmatpush1.msra.mxu0 0.0
  %310 = vmatprep.subr.mxu0 0.0
  %311 = vmatpush1.msra.mxu0 0.0
  %312 = vmatprep.subr.mxu0 0.0
  %313 = vmatpush1.msra.mxu0 0.0
  %314 = vmatprep.subr.mxu0 0.0
  %315 = vmatpush1.msra.mxu0 0.0
  %316 = vmatprep.subr.mxu0 0.0
  %317 = vmatpush1.msra.mxu0 0.0
  %318 = vmatprep.subr.mxu0 0.0
  %319 = vmatpush1.msra.mxu0 0.0
  %320 = vmatprep.subr.mxu0 0.0
  %321 = vmatpush1.msra.mxu0 0.0
  %322 = vmatprep.subr.mxu0 0.0
  %323 = vmatpush1.msra.mxu0 0.0
  %324 = vmatprep.subr.mxu0 0.0
  %325 = vmatpush1.msra.mxu0 0.0
  %326 = vmatprep.subr.mxu0 0.0
  %327 = vmatpush1.msra.mxu0 0.0
  %328 = vmatprep.subr.mxu0 0.0
  %329 = vmatpush1.msra.mxu0 0.0
  %330 = vmatprep.subr.mxu0 0.0
  %331 = vmatpush1.msra.mxu0 0.0
  %332 = vmatprep.subr.mxu0 0.0
  %333 = vmatpush1.msra.mxu0 0.0
  %334 = vmatprep.subr.mxu0 0.0
  %335 = vmatpush1.msra.mxu0 0.0
  %336 = vmatprep.subr.mxu0 0.0
  %337 = vmatpush1.msra.mxu0 0.0
  %338 = vmatprep.subr.mxu0 0.0
  %339 = vmatpush1.msra.mxu0 0.0
  %340 = vmatprep.subr.mxu0 0.0
  %341 = vmatpush1.msra.mxu0 0.0
  %342 = vmatprep.mubr.f32.mxu0 0.0
  %343 = vmatmul.mubr.f32.gmra.mrb[0].mxu0 %v276
  %v344 = vpop.f32.mrb[0].mxu0
  %v345 = vadd.f32 %v274, %v344
  %v346 = vpop.f32.mrb[0].mxu0
  %347 = vdwg.mxu0
  %v348 = vmax.f32 %v345, 0.0
  %vm349 = vcmask 261120
  %v350 = vsel %vm349, %v348, %v113
  %s351 = scalar_lea.vmem [#allocation2], 8
  %v352 = vld [vmem:[%s351] sm:$0xff]
  %v354 = vsel %vm257, %v350, 0
  %356 = vmatprep.subr.mxu0 0.0
  %357 = vmatpush1.msra.mxu0 %v266
  %358 = vmatprep.subr.mxu0 0.0
  %359 = vmatpush1.msra.mxu0 %v267
  %360 = vmatprep.subr.mxu0 0.0
  %361 = vmatpush1.msra.mxu0 %v268
  %362 = vmatprep.subr.mxu0 0.0
  %363 = vmatpush1.msra.mxu0 %v269
  %364 = vmatprep.subr.mxu0 0.0
  %365 = vmatpush1.msra.mxu0 %v270
  %366 = vmatprep.subr.mxu0 0.0
  %367 = vmatpush1.msra.mxu0 %v271
  %368 = vmatprep.subr.mxu0 0.0
  %369 = vmatpush1.msra.mxu0 %v272
  %370 = vmatprep.subr.mxu0 0.0
  %371 = vmatpush1.msra.mxu0 %v273
  %372 = vmatprep.subr.mxu0 0.0
  %373 = vmatpush1.msra.mxu0 0.0
  %374 = vmatprep.subr.mxu0 0.0
  %375 = vmatpush1.msra.mxu0 0.0
  %376 = vmatprep.subr.mxu0 0.0
  %377 = vmatpush1.msra.mxu0 0.0
  %378 = vmatprep.subr.mxu0 0.0
  %379 = vmatpush1.msra.mxu0 0.0
  %380 = vmatprep.subr.mxu0 0.0
  %381 = vmatpush1.msra.mxu0 0.0
  %382 = vmatprep.subr.mxu0 0.0
  %383 = vmatpush1.msra.mxu0 0.0
  %384 = vmatprep.subr.mxu0 0.0
  %385 = vmatpush1.msra.mxu0 0.0
  %386 = vmatprep.subr.mxu0 0.0
  %387 = vmatpush1.msra.mxu0 0.0
  %388 = vmatprep.subr.mxu0 0.0
  %389 = vmatpush1.msra.mxu0 0.0
  %390 = vmatprep.subr.mxu0 0.0
  %391 = vmatpush1.msra.mxu0 0.0
  %392 = vmatprep.subr.mxu0 0.0
  %393 = vmatpush1.msra.mxu0 0.0
  %394 = vmatprep.subr.mxu0 0.0
  %395 = vmatpush1.msra.mxu0 0.0
  %396 = vmatprep.subr.mxu0 0.0
  %397 = vmatpush1.msra.mxu0 0.0
  %398 = vmatprep.subr.mxu0 0.0
  %399 = vmatpush1.msra.mxu0 0.0
  %400 = vmatprep.subr.mxu0 0.0
  %401 = vmatpush1.msra.mxu0 0.0
  %402 = vmatprep.subr.mxu0 0.0
  %403 = vmatpush1.msra.mxu0 0.0
  %404 = vmatprep.subr.mxu0 0.0
  %405 = vmatpush1.msra.mxu0 0.0
  %406 = vmatprep.subr.mxu0 0.0
  %407 = vmatpush1.msra.mxu0 0.0
  %408 = vmatprep.subr.mxu0 0.0
  %409 = vmatpush1.msra.mxu0 0.0
  %410 = vmatprep.subr.mxu0 0.0
  %411 = vmatpush1.msra.mxu0 0.0
  %412 = vmatprep.subr.mxu0 0.0
  %413 = vmatpush1.msra.mxu0 0.0
  %414 = vmatprep.subr.mxu0 0.0
  %415 = vmatpush1.msra.mxu0 0.0
  %416 = vmatprep.subr.mxu0 0.0
  %417 = vmatpush1.msra.mxu0 0.0
  %418 = vmatprep.subr.mxu0 0.0
  %419 = vmatpush1.msra.mxu0 0.0
  %420 = vmatprep.mubr.f32.mxu0 0.0
  %421 = vmatmul.mubr.f32.gmra.mrb[0].mxu0 %v354
  %v422 = vpop.f32.mrb[0].mxu0
  %v423 = vadd.f32 %v352, %v422
  %v424 = vpop.f32.mrb[0].mxu0
  %425 = vdwg.mxu0
  %v426 = vmax.f32 %v423, 0.0
  %427 = vst.msk [vmem:[#allocation3] sm:$0xff] %vm257, %v426
  %s428 = scalar_lea.vmem [#allocation2], 16
  %v429 = vld [vmem:[%s428] sm:$0xff]
  %v431 = vsel %vm257, %v426, 0
  %433 = vmatprep.subr.mxu0 0.0
  %434 = vmatpush1.msra.mxu0 %v266
  %435 = vmatprep.subr.mxu0 0.0
  %436 = vmatpush1.msra.mxu0 %v267
  %437 = vmatprep.subr.mxu0 0.0
  %438 = vmatpush1.msra.mxu0 %v268
  %439 = vmatprep.subr.mxu0 0.0
  %440 = vmatpush1.msra.mxu0 %v269
  %441 = vmatprep.subr.mxu0 0.0
  %442 = vmatpush1.msra.mxu0 %v270
  %443 = vmatprep.subr.mxu0 0.0
  %444 = vmatpush1.msra.mxu0 %v271
  %445 = vmatprep.subr.mxu0 0.0
  %446 = vmatpush1.msra.mxu0 %v272
  %447 = vmatprep.subr.mxu0 0.0
  %448 = vmatpush1.msra.mxu0 %v273
  %449 = vmatprep.subr.mxu0 0.0
  %450 = vmatpush1.msra.mxu0 0.0
  %451 = vmatprep.subr.mxu0 0.0
  %452 = vmatpush1.msra.mxu0 0.0
  %453 = vmatprep.subr.mxu0 0.0
  %454 = vmatpush1.msra.mxu0 0.0
  %455 = vmatprep.subr.mxu0 0.0
  %456 = vmatpush1.msra.mxu0 0.0
  %457 = vmatprep.subr.mxu0 0.0
  %458 = vmatpush1.msra.mxu0 0.0
  %459 = vmatprep.subr.mxu0 0.0
  %460 = vmatpush1.msra.mxu0 0.0
  %461 = vmatprep.subr.mxu0 0.0
  %462 = vmatpush1.msra.mxu0 0.0
  %463 = vmatprep.subr.mxu0 0.0
  %464 = vmatpush1.msra.mxu0 0.0
  %465 = vmatprep.subr.mxu0 0.0
  %466 = vmatpush1.msra.mxu0 0.0
  %467 = vmatprep.subr.mxu0 0.0
  %468 = vmatpush1.msra.mxu0 0.0
  %469 = vmatprep.subr.mxu0 0.0
  %470 = vmatpush1.msra.mxu0 0.0
  %471 = vmatprep.subr.mxu0 0.0
  %472 = vmatpush1.msra.mxu0 0.0
  %473 = vmatprep.subr.mxu0 0.0
  %474 = vmatpush1.msra.mxu0 0.0
  %475 = vmatprep.subr.mxu0 0.0
  %476 = vmatpush1.msra.mxu0 0.0
  %477 = vmatprep.subr.mxu0 0.0
  %478 = vmatpush1.msra.mxu0 0.0
  %479 = vmatprep.subr.mxu0 0.0
  %480 = vmatpush1.msra.mxu0 0.0
  %481 = vmatprep.subr.mxu0 0.0
  %482 = vmatpush1.msra.mxu0 0.0
  %483 = vmatprep.subr.mxu0 0.0
  %484 = vmatpush1.msra.mxu0 0.0
  %485 = vmatprep.subr.mxu0 0.0
  %486 = vmatpush1.msra.mxu0 0.0
  %487 = vmatprep.subr.mxu0 0.0
  %488 = vmatpush1.msra.mxu0 0.0
  %489 = vmatprep.subr.mxu0 0.0
  %490 = vmatpush1.msra.mxu0 0.0
  %491 = vmatprep.subr.mxu0 0.0
  %492 = vmatpush1.msra.mxu0 0.0
  %493 = vmatprep.subr.mxu0 0.0
  %494 = vmatpush1.msra.mxu0 0.0
  %495 = vmatprep.subr.mxu0 0.0
  %496 = vmatpush1.msra.mxu0 0.0
  %497 = vmatprep.mubr.f32.mxu0 0.0
  %498 = vmatmul.mubr.f32.gmra.mrb[0].mxu0 %v431
  %v499 = vpop.f32.mrb[0].mxu0
  %v500 = vadd.f32 %v429, %v499
  %v501 = vpop.f32.mrb[0].mxu0
  %502 = vdwg.mxu0
  %v503 = vmax.f32 %v500, 0.0
  %s504 = scalar_lea.vmem [#allocation3], 8
  %505 = vst.msk [vmem:[%s504] sm:$0xff] %vm257, %v503
  %s506 = scalar_lea.vmem [#allocation2], 24
  %v507 = vld [vmem:[%s506] sm:$0xff]
  %v509 = vsel %vm257, %v503, 0
  %511 = vmatprep.subr.mxu0 0.0
  %512 = vmatpush1.msra.mxu0 %v266
  %513 = vmatprep.subr.mxu0 0.0
  %514 = vmatpush1.msra.mxu0 %v267
  %515 = vmatprep.subr.mxu0 0.0
  %516 = vmatpush1.msra.mxu0 %v268
  %517 = vmatprep.subr.mxu0 0.0
  %518 = vmatpush1.msra.mxu0 %v269
  %519 = vmatprep.subr.mxu0 0.0
  %520 = vmatpush1.msra.mxu0 %v270
  %521 = vmatprep.subr.mxu0 0.0
  %522 = vmatpush1.msra.mxu0 %v271
  %523 = vmatprep.subr.mxu0 0.0
  %524 = vmatpush1.msra.mxu0 %v272
  %525 = vmatprep.subr.mxu0 0.0
  %526 = vmatpush1.msra.mxu0 %v273
  %527 = vmatprep.subr.mxu0 0.0
  %528 = vmatpush1.msra.mxu0 0.0
  %529 = vmatprep.subr.mxu0 0.0
  %530 = vmatpush1.msra.mxu0 0.0
  %531 = vmatprep.subr.mxu0 0.0
  %532 = vmatpush1.msra.mxu0 0.0
  %533 = vmatprep.subr.mxu0 0.0
  %534 = vmatpush1.msra.mxu0 0.0
  %535 = vmatprep.subr.mxu0 0.0
  %536 = vmatpush1.msra.mxu0 0.0
  %537 = vmatprep.subr.mxu0 0.0
  %538 = vmatpush1.msra.mxu0 0.0
  %539 = vmatprep.subr.mxu0 0.0
  %540 = vmatpush1.msra.mxu0 0.0
  %541 = vmatprep.subr.mxu0 0.0
  %542 = vmatpush1.msra.mxu0 0.0
  %543 = vmatprep.subr.mxu0 0.0
  %544 = vmatpush1.msra.mxu0 0.0
  %545 = vmatprep.subr.mxu0 0.0
  %546 = vmatpush1.msra.mxu0 0.0
  %547 = vmatprep.subr.mxu0 0.0
  %548 = vmatpush1.msra.mxu0 0.0
  %549 = vmatprep.subr.mxu0 0.0
  %550 = vmatpush1.msra.mxu0 0.0
  %551 = vmatprep.subr.mxu0 0.0
  %552 = vmatpush1.msra.mxu0 0.0
  %553 = vmatprep.subr.mxu0 0.0
  %554 = vmatpush1.msra.mxu0 0.0
  %555 = vmatprep.subr.mxu0 0.0
  %556 = vmatpush1.msra.mxu0 0.0
  %557 = vmatprep.subr.mxu0 0.0
  %558 = vmatpush1.msra.mxu0 0.0
  %559 = vmatprep.subr.mxu0 0.0
  %560 = vmatpush1.msra.mxu0 0.0
  %561 = vmatprep.subr.mxu0 0.0
  %562 = vmatpush1.msra.mxu0 0.0
  %563 = vmatprep.subr.mxu0 0.0
  %564 = vmatpush1.msra.mxu0 0.0
  %565 = vmatprep.subr.mxu0 0.0
  %566 = vmatpush1.msra.mxu0 0.0
  %567 = vmatprep.subr.mxu0 0.0
  %568 = vmatpush1.msra.mxu0 0.0
  %569 = vmatprep.subr.mxu0 0.0
  %570 = vmatpush1.msra.mxu0 0.0
  %571 = vmatprep.subr.mxu0 0.0
  %572 = vmatpush1.msra.mxu0 0.0
  %573 = vmatprep.subr.mxu0 0.0
  %574 = vmatpush1.msra.mxu0 0.0
  %575 = vmatprep.mubr.f32.mxu0 0.0
  %576 = vmatmul.mubr.f32.gmra.mrb[0].mxu0 %v509
  %v577 = vpop.f32.mrb[0].mxu0
  %v578 = vadd.f32 %v507, %v577
  %v579 = vpop.f32.mrb[0].mxu0
  %580 = vdwg.mxu0
  %v581 = vmax.f32 %v578, 0.0
  %s582 = scalar_lea.vmem [#allocation3], 16
  %583 = vst.msk [vmem:[%s582] sm:$0xff] %vm257, %v581
  %s584 = scalar_lea.vmem [#allocation2], 32
  %v585 = vld [vmem:[%s584] sm:$0xff]
  %v587 = vsel %vm257, %v581, 0
  %589 = vmatprep.subr.mxu0 0.0
  %590 = vmatpush1.msra.mxu0 %v266
  %591 = vmatprep.subr.mxu0 0.0
  %592 = vmatpush1.msra.mxu0 %v267
  %593 = vmatprep.subr.mxu0 0.0
  %594 = vmatpush1.msra.mxu0 %v268
  %595 = vmatprep.subr.mxu0 0.0
  %596 = vmatpush1.msra.mxu0 %v269
  %597 = vmatprep.subr.mxu0 0.0
  %598 = vmatpush1.msra.mxu0 %v270
  %599 = vmatprep.subr.mxu0 0.0
  %600 = vmatpush1.msra.mxu0 %v271
  %601 = vmatprep.subr.mxu0 0.0
  %602 = vmatpush1.msra.mxu0 %v272
  %603 = vmatprep.subr.mxu0 0.0
  %604 = vmatpush1.msra.mxu0 %v273
  %605 = vmatprep.subr.mxu0 0.0
  %606 = vmatpush1.msra.mxu0 0.0
  %607 = vmatprep.subr.mxu0 0.0
  %608 = vmatpush1.msra.mxu0 0.0
  %609 = vmatprep.subr.mxu0 0.0
  %610 = vmatpush1.msra.mxu0 0.0
  %611 = vmatprep.subr.mxu0 0.0
  %612 = vmatpush1.msra.mxu0 0.0
  %613 = vmatprep.subr.mxu0 0.0
  %614 = vmatpush1.msra.mxu0 0.0
  %615 = vmatprep.subr.mxu0 0.0
  %616 = vmatpush1.msra.mxu0 0.0
  %617 = vmatprep.subr.mxu0 0.0
  %618 = vmatpush1.msra.mxu0 0.0
  %619 = vmatprep.subr.mxu0 0.0
  %620 = vmatpush1.msra.mxu0 0.0
  %621 = vmatprep.subr.mxu0 0.0
  %622 = vmatpush1.msra.mxu0 0.0
  %623 = vmatprep.subr.mxu0 0.0
  %624 = vmatpush1.msra.mxu0 0.0
  %625 = vmatprep.subr.mxu0 0.0
  %626 = vmatpush1.msra.mxu0 0.0
  %627 = vmatprep.subr.mxu0 0.0
  %628 = vmatpush1.msra.mxu0 0.0
  %629 = vmatprep.subr.mxu0 0.0
  %630 = vmatpush1.msra.mxu0 0.0
  %631 = vmatprep.subr.mxu0 0.0
  %632 = vmatpush1.msra.mxu0 0.0
  %633 = vmatprep.subr.mxu0 0.0
  %634 = vmatpush1.msra.mxu0 0.0
  %635 = vmatprep.subr.mxu0 0.0
  %636 = vmatpush1.msra.mxu0 0.0
  %637 = vmatprep.subr.mxu0 0.0
  %638 = vmatpush1.msra.mxu0 0.0
  %639 = vmatprep.subr.mxu0 0.0
  %640 = vmatpush1.msra.mxu0 0.0
  %641 = vmatprep.subr.mxu0 0.0
  %642 = vmatpush1.msra.mxu0 0.0
  %643 = vmatprep.subr.mxu0 0.0
  %644 = vmatpush1.msra.mxu0 0.0
  %645 = vmatprep.subr.mxu0 0.0
  %646 = vmatpush1.msra.mxu0 0.0
  %647 = vmatprep.subr.mxu0 0.0
  %648 = vmatpush1.msra.mxu0 0.0
  %649 = vmatprep.subr.mxu0 0.0
  %650 = vmatpush1.msra.mxu0 0.0
  %651 = vmatprep.subr.mxu0 0.0
  %652 = vmatpush1.msra.mxu0 0.0
  %653 = vmatprep.mubr.f32.mxu0 0.0
  %654 = vmatmul.mubr.f32.gmra.mrb[0].mxu0 %v587
  %v655 = vpop.f32.mrb[0].mxu0
  %v656 = vadd.f32 %v585, %v655
  %v657 = vpop.f32.mrb[0].mxu0
  %658 = vdwg.mxu0
  %v659 = vmax.f32 %v656, 0.0
  %s660 = scalar_lea.vmem [#allocation3], 24
  %661 = vst.msk [vmem:[%s660] sm:$0xff] %vm257, %v659
  %s662 = scalar_lea.vmem [#allocation2], 40
  %v663 = vld [vmem:[%s662] sm:$0xff]
  %v665 = vsel %vm257, %v659, 0
  %667 = vmatprep.subr.mxu0 0.0
  %668 = vmatpush1.msra.mxu0 %v266
  %669 = vmatprep.subr.mxu0 0.0
  %670 = vmatpush1.msra.mxu0 %v267
  %671 = vmatprep.subr.mxu0 0.0
  %672 = vmatpush1.msra.mxu0 %v268
  %673 = vmatprep.subr.mxu0 0.0
  %674 = vmatpush1.msra.mxu0 %v269
  %675 = vmatprep.subr.mxu0 0.0
  %676 = vmatpush1.msra.mxu0 %v270
  %677 = vmatprep.subr.mxu0 0.0
  %678 = vmatpush1.msra.mxu0 %v271
  %679 = vmatprep.subr.mxu0 0.0
  %680 = vmatpush1.msra.mxu0 %v272
  %681 = vmatprep.subr.mxu0 0.0
  %682 = vmatpush1.msra.mxu0 %v273
  %683 = vmatprep.subr.mxu0 0.0
  %684 = vmatpush1.msra.mxu0 0.0
  %685 = vmatprep.subr.mxu0 0.0
  %686 = vmatpush1.msra.mxu0 0.0
  %687 = vmatprep.subr.mxu0 0.0
  %688 = vmatpush1.msra.mxu0 0.0
  %689 = vmatprep.subr.mxu0 0.0
  %690 = vmatpush1.msra.mxu0 0.0
  %691 = vmatprep.subr.mxu0 0.0
  %692 = vmatpush1.msra.mxu0 0.0
  %693 = vmatprep.subr.mxu0 0.0
  %694 = vmatpush1.msra.mxu0 0.0
  %695 = vmatprep.subr.mxu0 0.0
  %696 = vmatpush1.msra.mxu0 0.0
  %697 = vmatprep.subr.mxu0 0.0
  %698 = vmatpush1.msra.mxu0 0.0
  %699 = vmatprep.subr.mxu0 0.0
  %700 = vmatpush1.msra.mxu0 0.0
  %701 = vmatprep.subr.mxu0 0.0
  %702 = vmatpush1.msra.mxu0 0.0
  %703 = vmatprep.subr.mxu0 0.0
  %704 = vmatpush1.msra.mxu0 0.0
  %705 = vmatprep.subr.mxu0 0.0
  %706 = vmatpush1.msra.mxu0 0.0
  %707 = vmatprep.subr.mxu0 0.0
  %708 = vmatpush1.msra.mxu0 0.0
  %709 = vmatprep.subr.mxu0 0.0
  %710 = vmatpush1.msra.mxu0 0.0
  %711 = vmatprep.subr.mxu0 0.0
  %712 = vmatpush1.msra.mxu0 0.0
  %713 = vmatprep.subr.mxu0 0.0
  %714 = vmatpush1.msra.mxu0 0.0
  %715 = vmatprep.subr.mxu0 0.0
  %716 = vmatpush1.msra.mxu0 0.0
  %717 = vmatprep.subr.mxu0 0.0
  %718 = vmatpush1.msra.mxu0 0.0
  %719 = vmatprep.subr.mxu0 0.0
  %720 = vmatpush1.msra.mxu0 0.0
  %721 = vmatprep.subr.mxu0 0.0
  %722 = vmatpush1.msra.mxu0 0.0
  %723 = vmatprep.subr.mxu0 0.0
  %724 = vmatpush1.msra.mxu0 0.0
  %725 = vmatprep.subr.mxu0 0.0
  %726 = vmatpush1.msra.mxu0 0.0
  %727 = vmatprep.subr.mxu0 0.0
  %728 = vmatpush1.msra.mxu0 0.0
  %729 = vmatprep.subr.mxu0 0.0
  %730 = vmatpush1.msra.mxu0 0.0
  %731 = vmatprep.mubr.f32.mxu0 0.0
  %732 = vmatmul.mubr.f32.gmra.mrb[0].mxu0 %v665
  %v733 = vpop.f32.mrb[0].mxu0
  %v734 = vadd.f32 %v663, %v733
  %v735 = vpop.f32.mrb[0].mxu0
  %736 = vdwg.mxu0
  %v737 = vmax.f32 %v734, 0.0
  %s738 = scalar_lea.vmem [#allocation3], 32
  %739 = vst.msk [vmem:[%s738] sm:$0xff] %vm257, %v737
  %s740 = scalar_lea.vmem [#allocation2], 48
  %v741 = vld [vmem:[%s740] sm:$0xff]
  %v743 = vsel %vm257, %v737, 0
  %745 = vmatprep.subr.mxu0 0.0
  %746 = vmatpush1.msra.mxu0 %v266
  %747 = vmatprep.subr.mxu0 0.0
  %748 = vmatpush1.msra.mxu0 %v267
  %749 = vmatprep.subr.mxu0 0.0
  %750 = vmatpush1.msra.mxu0 %v268
  %751 = vmatprep.subr.mxu0 0.0
  %752 = vmatpush1.msra.mxu0 %v269
  %753 = vmatprep.subr.mxu0 0.0
  %754 = vmatpush1.msra.mxu0 %v270
  %755 = vmatprep.subr.mxu0 0.0
  %756 = vmatpush1.msra.mxu0 %v271
  %757 = vmatprep.subr.mxu0 0.0
  %758 = vmatpush1.msra.mxu0 %v272
  %759 = vmatprep.subr.mxu0 0.0
  %760 = vmatpush1.msra.mxu0 %v273
  %761 = vmatprep.subr.mxu0 0.0
  %762 = vmatpush1.msra.mxu0 0.0
  %763 = vmatprep.subr.mxu0 0.0
  %764 = vmatpush1.msra.mxu0 0.0
  %765 = vmatprep.subr.mxu0 0.0
  %766 = vmatpush1.msra.mxu0 0.0
  %767 = vmatprep.subr.mxu0 0.0
  %768 = vmatpush1.msra.mxu0 0.0
  %769 = vmatprep.subr.mxu0 0.0
  %770 = vmatpush1.msra.mxu0 0.0
  %771 = vmatprep.subr.mxu0 0.0
  %772 = vmatpush1.msra.mxu0 0.0
  %773 = vmatprep.subr.mxu0 0.0
  %774 = vmatpush1.msra.mxu0 0.0
  %775 = vmatprep.subr.mxu0 0.0
  %776 = vmatpush1.msra.mxu0 0.0
  %777 = vmatprep.subr.mxu0 0.0
  %778 = vmatpush1.msra.mxu0 0.0
  %779 = vmatprep.subr.mxu0 0.0
  %780 = vmatpush1.msra.mxu0 0.0
  %781 = vmatprep.subr.mxu0 0.0
  %782 = vmatpush1.msra.mxu0 0.0
  %783 = vmatprep.subr.mxu0 0.0
  %784 = vmatpush1.msra.mxu0 0.0
  %785 = vmatprep.subr.mxu0 0.0
  %786 = vmatpush1.msra.mxu0 0.0
  %787 = vmatprep.subr.mxu0 0.0
  %788 = vmatpush1.msra.mxu0 0.0
  %789 = vmatprep.subr.mxu0 0.0
  %790 = vmatpush1.msra.mxu0 0.0
  %791 = vmatprep.subr.mxu0 0.0
  %792 = vmatpush1.msra.mxu0 0.0
  %793 = vmatprep.subr.mxu0 0.0
  %794 = vmatpush1.msra.mxu0 0.0
  %795 = vmatprep.subr.mxu0 0.0
  %796 = vmatpush1.msra.mxu0 0.0
  %797 = vmatprep.subr.mxu0 0.0
  %798 = vmatpush1.msra.mxu0 0.0
  %799 = vmatprep.subr.mxu0 0.0
  %800 = vmatpush1.msra.mxu0 0.0
  %801 = vmatprep.subr.mxu0 0.0
  %802 = vmatpush1.msra.mxu0 0.0
  %803 = vmatprep.subr.mxu0 0.0
  %804 = vmatpush1.msra.mxu0 0.0
  %805 = vmatprep.subr.mxu0 0.0
  %806 = vmatpush1.msra.mxu0 0.0
  %807 = vmatprep.subr.mxu0 0.0
  %808 = vmatpush1.msra.mxu0 0.0
  %809 = vmatprep.mubr.f32.mxu0 0.0
  %810 = vmatmul.mubr.f32.gmra.mrb[0].mxu0 %v743
  %v811 = vpop.f32.mrb[0].mxu0
  %v812 = vadd.f32 %v741, %v811
  %v813 = vpop.f32.mrb[0].mxu0
  %814 = vdwg.mxu0
  %v815 = vmax.f32 %v812, 0.0
  %s816 = scalar_lea.vmem [#allocation3], 40
  %817 = vst.msk [vmem:[%s816] sm:$0xff] %vm257, %v815
  %s818 = scalar_lea.vmem [#allocation2], 56
  %v819 = vld [vmem:[%s818] sm:$0xff]
  %v821 = vsel %vm257, %v815, 0
  %823 = vmatprep.subr.mxu0 0.0
  %824 = vmatpush1.msra.mxu0 %v266
  %825 = vmatprep.subr.mxu0 0.0
  %826 = vmatpush1.msra.mxu0 %v267
  %827 = vmatprep.subr.mxu0 0.0
  %828 = vmatpush1.msra.mxu0 %v268
  %829 = vmatprep.subr.mxu0 0.0
  %830 = vmatpush1.msra.mxu0 %v269
  %831 = vmatprep.subr.mxu0 0.0
  %832 = vmatpush1.msra.mxu0 %v270
  %833 = vmatprep.subr.mxu0 0.0
  %834 = vmatpush1.msra.mxu0 %v271
  %835 = vmatprep.subr.mxu0 0.0
  %836 = vmatpush1.msra.mxu0 %v272
  %837 = vmatprep.subr.mxu0 0.0
  %838 = vmatpush1.msra.mxu0 %v273
  %839 = vmatprep.subr.mxu0 0.0
  %840 = vmatpush1.msra.mxu0 0.0
  %841 = vmatprep.subr.mxu0 0.0
  %842 = vmatpush1.msra.mxu0 0.0
  %843 = vmatprep.subr.mxu0 0.0
  %844 = vmatpush1.msra.mxu0 0.0
  %845 = vmatprep.subr.mxu0 0.0
  %846 = vmatpush1.msra.mxu0 0.0
  %847 = vmatprep.subr.mxu0 0.0
  %848 = vmatpush1.msra.mxu0 0.0
  %849 = vmatprep.subr.mxu0 0.0
  %850 = vmatpush1.msra.mxu0 0.0
  %851 = vmatprep.subr.mxu0 0.0
  %852 = vmatpush1.msra.mxu0 0.0
  %853 = vmatprep.subr.mxu0 0.0
  %854 = vmatpush1.msra.mxu0 0.0
  %855 = vmatprep.subr.mxu0 0.0
  %856 = vmatpush1.msra.mxu0 0.0
  %857 = vmatprep.subr.mxu0 0.0
  %858 = vmatpush1.msra.mxu0 0.0
  %859 = vmatprep.subr.mxu0 0.0
  %860 = vmatpush1.msra.mxu0 0.0
  %861 = vmatprep.subr.mxu0 0.0
  %862 = vmatpush1.msra.mxu0 0.0
  %863 = vmatprep.subr.mxu0 0.0
  %864 = vmatpush1.msra.mxu0 0.0
  %865 = vmatprep.subr.mxu0 0.0
  %866 = vmatpush1.msra.mxu0 0.0
  %867 = vmatprep.subr.mxu0 0.0
  %868 = vmatpush1.msra.mxu0 0.0
  %869 = vmatprep.subr.mxu0 0.0
  %870 = vmatpush1.msra.mxu0 0.0
  %871 = vmatprep.subr.mxu0 0.0
  %872 = vmatpush1.msra.mxu0 0.0
  %873 = vmatprep.subr.mxu0 0.0
  %874 = vmatpush1.msra.mxu0 0.0
  %875 = vmatprep.subr.mxu0 0.0
  %876 = vmatpush1.msra.mxu0 0.0
  %877 = vmatprep.subr.mxu0 0.0
  %878 = vmatpush1.msra.mxu0 0.0
  %879 = vmatprep.subr.mxu0 0.0
  %880 = vmatpush1.msra.mxu0 0.0
  %881 = vmatprep.subr.mxu0 0.0
  %882 = vmatpush1.msra.mxu0 0.0
  %883 = vmatprep.subr.mxu0 0.0
  %884 = vmatpush1.msra.mxu0 0.0
  %885 = vmatprep.subr.mxu0 0.0
  %886 = vmatpush1.msra.mxu0 0.0
  %887 = vmatprep.mubr.f32.mxu0 0.0
  %888 = vmatmul.mubr.f32.gmra.mrb[0].mxu0 %v821
  %v889 = vpop.f32.mrb[0].mxu0
  %v890 = vadd.f32 %v819, %v889
  %v891 = vpop.f32.mrb[0].mxu0
  %892 = vdwg.mxu0
  %v893 = vmax.f32 %v890, 0.0
  %s894 = scalar_lea.vmem [#allocation3], 48
  %895 = vst.msk [vmem:[%s894] sm:$0xff] %vm257, %v893
  %v897 = vsel %vm257, %v893, 0
  %899 = vmatprep.subr.mxu0 0.0
  %900 = vmatpush1.msra.mxu0 %v266
  %901 = vmatprep.subr.mxu0 0.0
  %902 = vmatpush1.msra.mxu0 %v267
  %903 = vmatprep.subr.mxu0 0.0
  %904 = vmatpush1.msra.mxu0 %v268
  %905 = vmatprep.subr.mxu0 0.0
  %906 = vmatpush1.msra.mxu0 %v269
  %907 = vmatprep.subr.mxu0 0.0
  %908 = vmatpush1.msra.mxu0 %v270
  %909 = vmatprep.subr.mxu0 0.0
  %910 = vmatpush1.msra.mxu0 %v271
  %911 = vmatprep.subr.mxu0 0.0
  %912 = vmatpush1.msra.mxu0 %v272
  %913 = vmatprep.subr.mxu0 0.0
  %914 = vmatpush1.msra.mxu0 %v273
  %915 = vmatprep.subr.mxu0 0.0
  %916 = vmatpush1.msra.mxu0 0.0
  %917 = vmatprep.subr.mxu0 0.0
  %918 = vmatpush1.msra.mxu0 0.0
  %919 = vmatprep.subr.mxu0 0.0
  %920 = vmatpush1.msra.mxu0 0.0
  %921 = vmatprep.subr.mxu0 0.0
  %922 = vmatpush1.msra.mxu0 0.0
  %923 = vmatprep.subr.mxu0 0.0
  %924 = vmatpush1.msra.mxu0 0.0
  %925 = vmatprep.subr.mxu0 0.0
  %926 = vmatpush1.msra.mxu0 0.0
  %927 = vmatprep.subr.mxu0 0.0
  %928 = vmatpush1.msra.mxu0 0.0
  %929 = vmatprep.subr.mxu0 0.0
  %930 = vmatpush1.msra.mxu0 0.0
  %931 = vmatprep.subr.mxu0 0.0
  %932 = vmatpush1.msra.mxu0 0.0
  %933 = vmatprep.subr.mxu0 0.0
  %934 = vmatpush1.msra.mxu0 0.0
  %935 = vmatprep.subr.mxu0 0.0
  %936 = vmatpush1.msra.mxu0 0.0
  %937 = vmatprep.subr.mxu0 0.0
  %938 = vmatpush1.msra.mxu0 0.0
  %939 = vmatprep.subr.mxu0 0.0
  %940 = vmatpush1.msra.mxu0 0.0
  %941 = vmatprep.subr.mxu0 0.0
  %942 = vmatpush1.msra.mxu0 0.0
  %943 = vmatprep.subr.mxu0 0.0
  %944 = vmatpush1.msra.mxu0 0.0
  %945 = vmatprep.subr.mxu0 0.0
  %946 = vmatpush1.msra.mxu0 0.0
  %947 = vmatprep.subr.mxu0 0.0
  %948 = vmatpush1.msra.mxu0 0.0
  %949 = vmatprep.subr.mxu0 0.0
  %950 = vmatpush1.msra.mxu0 0.0
  %951 = vmatprep.subr.mxu0 0.0
  %952 = vmatpush1.msra.mxu0 0.0
  %953 = vmatprep.subr.mxu0 0.0
  %954 = vmatpush1.msra.mxu0 0.0
  %955 = vmatprep.subr.mxu0 0.0
  %956 = vmatpush1.msra.mxu0 0.0
  %957 = vmatprep.subr.mxu0 0.0
  %958 = vmatpush1.msra.mxu0 0.0
  %959 = vmatprep.subr.mxu0 0.0
  %960 = vmatpush1.msra.mxu0 0.0
  %961 = vmatprep.subr.mxu0 0.0
  %962 = vmatpush1.msra.mxu0 0.0
  %963 = vmatprep.mubr.f32.mxu0 0.0
  %964 = vmatmul.mubr.f32.gmra.mrb[0].mxu0 %v897
  %v965 = vpop.f32.mrb[0].mxu0
  %v966 = vadd.f32 0.0, %v965
  %v967 = vpop.f32.mrb[0].mxu0
  %968 = vdwg.mxu0
  %v969 = vmax.f32 %v966, 0.0
  %970 = vst.msk [vmem:[#allocation3 + $0x38] sm:$0xff] %vm257, %v969
  %v971 = vld [vmem:[#allocation3] sm:$0xff]
  %v972 = vld [vmem:[#allocation3 + $0x8] sm:$0xff]
  %v973 = vld [vmem:[#allocation3 + $0x10] sm:$0xff]
  %v974 = vld [vmem:[#allocation3 + $0x18] sm:$0xff]
  %v975 = vld [vmem:[#allocation3 + $0x20] sm:$0xff]
  %v976 = vld [vmem:[#allocation3 + $0x28] sm:$0xff]
  %v977 = vld [vmem:[#allocation3 + $0x30] sm:$0xff]
  %v978 = vld [vmem:[#allocation3 + $0x38] sm:$0xff]
  %v979 = vld [vmem:[%s6] sm:$0xff]
  %v980 = vld [vmem:[%s6 + $0x8] sm:$0xff]
  %v981 = vld [vmem:[%s6 + $0x10] sm:$0xff]
  %v982 = vld [vmem:[%s6 + $0x18] sm:$0xff]
  %v983 = vld [vmem:[%s6 + $0x20] sm:$0xff]
  %v984 = vld [vmem:[%s6 + $0x28] sm:$0xff]
  %v985 = vld [vmem:[%s6 + $0x30] sm:$0xff]
  %v986 = vld [vmem:[%s6 + $0x38] sm:$0xff]
  %v987 = vld [vmem:[%s7] sm:$0x1]
  %v989 = vlaneseq
  %v990 = vshrl.u32 %v989, 7
  %v991 = vsub.s32 0, %v990
  %v992 = vrot.slane %v987, %v991
  %v995 = vsel %vm257, %v971, 0
  %v998 = vsel %vm257, %v972, 0
  %v1001 = vsel %vm257, %v973, 0
  %v1004 = vsel %vm257, %v974, 0
  %v1007 = vsel %vm257, %v975, 0
  %v1010 = vsel %vm257, %v976, 0
  %v1013 = vsel %vm257, %v977, 0
  %v1016 = vsel %vm257, %v978, 0
  %1018 = vmatprep.subr.mxu0 0.0
  %1019 = vmatpush1.msra.mxu0 %v979
  %1020 = vmatprep.subr.mxu0 0.0
  %1021 = vmatpush1.msra.mxu0 %v980
  %1022 = vmatprep.subr.mxu0 0.0
  %1023 = vmatpush1.msra.mxu0 %v981
  %1024 = vmatprep.subr.mxu0 0.0
  %1025 = vmatpush1.msra.mxu0 %v982
  %1026 = vmatprep.subr.mxu0 0.0
  %1027 = vmatpush1.msra.mxu0 %v983
  %1028 = vmatprep.subr.mxu0 0.0
  %1029 = vmatpush1.msra.mxu0 %v984
  %1030 = vmatprep.subr.mxu0 0.0
  %1031 = vmatpush1.msra.mxu0 %v985
  %1032 = vmatprep.subr.mxu0 0.0
  %1033 = vmatpush1.msra.mxu0 %v986
  %1034 = vmatprep.subr.mxu0 0.0
  %1035 = vmatpush1.msra.mxu0 0.0
  %1036 = vmatprep.subr.mxu0 0.0
  %1037 = vmatpush1.msra.mxu0 0.0
  %1038 = vmatprep.subr.mxu0 0.0
  %1039 = vmatpush1.msra.mxu0 0.0
  %1040 = vmatprep.subr.mxu0 0.0
  %1041 = vmatpush1.msra.mxu0 0.0
  %1042 = vmatprep.subr.mxu0 0.0
  %1043 = vmatpush1.msra.mxu0 0.0
  %1044 = vmatprep.subr.mxu0 0.0
  %1045 = vmatpush1.msra.mxu0 0.0
  %1046 = vmatprep.subr.mxu0 0.0
  %1047 = vmatpush1.msra.mxu0 0.0
  %1048 = vmatprep.subr.mxu0 0.0
  %1049 = vmatpush1.msra.mxu0 0.0
  %1050 = vmatprep.subr.mxu0 0.0
  %1051 = vmatpush1.msra.mxu0 0.0
  %1052 = vmatprep.subr.mxu0 0.0
  %1053 = vmatpush1.msra.mxu0 0.0
  %1054 = vmatprep.subr.mxu0 0.0
  %1055 = vmatpush1.msra.mxu0 0.0
  %1056 = vmatprep.subr.mxu0 0.0
  %1057 = vmatpush1.msra.mxu0 0.0
  %1058 = vmatprep.subr.mxu0 0.0
  %1059 = vmatpush1.msra.mxu0 0.0
  %1060 = vmatprep.subr.mxu0 0.0
  %1061 = vmatpush1.msra.mxu0 0.0
  %1062 = vmatprep.subr.mxu0 0.0
  %1063 = vmatpush1.msra.mxu0 0.0
  %1064 = vmatprep.subr.mxu0 0.0
  %1065 = vmatpush1.msra.mxu0 0.0
  %1066 = vmatprep.subr.mxu0 0.0
  %1067 = vmatpush1.msra.mxu0 0.0
  %1068 = vmatprep.subr.mxu0 0.0
  %1069 = vmatpush1.msra.mxu0 0.0
  %1070 = vmatprep.subr.mxu0 0.0
  %1071 = vmatpush1.msra.mxu0 0.0
  %1072 = vmatprep.subr.mxu0 0.0
  %1073 = vmatpush1.msra.mxu0 0.0
  %1074 = vmatprep.subr.mxu0 0.0
  %1075 = vmatpush1.msra.mxu0 0.0
  %1076 = vmatprep.subr.mxu0 0.0
  %1077 = vmatpush1.msra.mxu0 0.0
  %1078 = vmatprep.subr.mxu0 0.0
  %1079 = vmatpush1.msra.mxu0 0.0
  %1080 = vmatprep.subr.mxu0 0.0
  %1081 = vmatpush1.msra.mxu0 0.0
  %1082 = vmatprep.mubr.f32.mxu0 0.0
  %1083 = vmatmul.mubr.f32.gmra.mrb[0].mxu0 %v995
  %v1084 = vpop.f32.mrb[0].mxu0
  %v1085 = vadd.f32 %v992, %v1084
  %v1086 = vpop.f32.mrb[0].mxu0
  %1087 = vmatprep.mubr.f32.mxu0 0.0
  %1088 = vmatmul.mubr.f32.gmra.mrb[0].mxu0 %v998
  %v1089 = vpop.f32.mrb[0].mxu0
  %v1090 = vadd.f32 %v992, %v1089
  %v1091 = vpop.f32.mrb[0].mxu0
  %1092 = vmatprep.mubr.f32.mxu0 0.0
  %1093 = vmatmul.mubr.f32.gmra.mrb[0].mxu0 %v1001
  %v1094 = vpop.f32.mrb[0].mxu0
  %v1095 = vadd.f32 %v992, %v1094
  %v1096 = vpop.f32.mrb[0].mxu0
  %1097 = vmatprep.mubr.f32.mxu0 0.0
  %1098 = vmatmul.mubr.f32.gmra.mrb[0].mxu0 %v1004
  %v1099 = vpop.f32.mrb[0].mxu0
  %v1100 = vadd.f32 %v992, %v1099
  %v1101 = vpop.f32.mrb[0].mxu0
  %1102 = vmatprep.mubr.f32.mxu0 0.0
  %1103 = vmatmul.mubr.f32.gmra.mrb[0].mxu0 %v1007
  %v1104 = vpop.f32.mrb[0].mxu0
  %v1105 = vadd.f32 %v992, %v1104
  %v1106 = vpop.f32.mrb[0].mxu0
  %1107 = vmatprep.mubr.f32.mxu0 0.0
  %1108 = vmatmul.mubr.f32.gmra.mrb[0].mxu0 %v1010
  %v1109 = vpop.f32.mrb[0].mxu0
  %v1110 = vadd.f32 %v992, %v1109
  %v1111 = vpop.f32.mrb[0].mxu0
  %1112 = vmatprep.mubr.f32.mxu0 0.0
  %1113 = vmatmul.mubr.f32.gmra.mrb[0].mxu0 %v1013
  %v1114 = vpop.f32.mrb[0].mxu0
  %v1115 = vadd.f32 %v992, %v1114
  %v1116 = vpop.f32.mrb[0].mxu0
  %1117 = vmatprep.mubr.f32.mxu0 0.0
  %1118 = vmatmul.mubr.f32.gmra.mrb[0].mxu0 %v1016
  %v1119 = vpop.f32.mrb[0].mxu0
  %v1120 = vadd.f32 %v992, %v1119
  %v1121 = vpop.f32.mrb[0].mxu0
  %1122 = vdwg.mxu0
  %1123 = vst [vmem:[%s8] sm:$0xff] %v1085
  %1124 = vst [vmem:[%s8 + $0x8] sm:$0xff] %v1090
  %1125 = vst [vmem:[%s8 + $0x10] sm:$0xff] %v1095
  %1126 = vst [vmem:[%s8 + $0x18] sm:$0xff] %v1100
  %1127 = vst [vmem:[%s8 + $0x20] sm:$0xff] %v1105
  %1128 = vst [vmem:[%s8 + $0x28] sm:$0xff] %v1110
  %1129 = vst [vmem:[%s8 + $0x30] sm:$0xff] %v1115
  %1130 = vst [vmem:[%s8 + $0x38] sm:$0xff] %v1120
  // Predicated region
  $region34: #{rnn_multilayer_forward.1} parent=0 // pred_check
    _
  $region35: #{rnn_multilayer_forward.1} parent=0 // pred_check_branch
    %1132 = sbr.rel (0) target = $region37
  $region36: #{rnn_multilayer_forward.1} parent=0 // pred_region
    _
  $region37: #{rnn_multilayer_forward.1} parent=0 // pred_fallthru
    _
  // Predicated region
  $region38: #{rnn_multilayer_forward.1} parent=0 // pred_check
    _
  $region39: #{rnn_multilayer_forward.1} parent=0 // pred_check_branch
    %1134 = sbr.rel (0) target = $region41
  $region40: #{rnn_multilayer_forward.1} parent=0 // pred_region
    _
  $region41: #{rnn_multilayer_forward.1} parent=0 // pred_fallthru
    _

</llo_original>
